<compile_context>
chip_gen: v7x
topology: tpu7x:2x2x1
jax: 0.10.0
libtpu: 0.0.40
codegen_flags: <defaults>
</compile_context>

<pallas_src>
import jax
import jax.numpy as jnp
from jax.experimental import pallas as pl
from jax.experimental.pallas import tpu as pltpu


def _round_up(x, m):
    return ((x + m - 1) // m) * m


def ffn_kernel(x_ref, w1_ref, b1_ref, w2_ref, b2_ref, o_ref, acc_ref):
    """Grid = (row-tile i, d_ff-tile j); j is the reduction axis for fc2."""
    j = pl.program_id(1)

    @pl.when(j == 0)
    def _():
        acc_ref[...] = jnp.zeros_like(acc_ref)

    # fc1 on this d_ff chunk: bf16 operands, f32 accumulation, f32 bias+ReLU.
    h = jnp.dot(x_ref[...], w1_ref[...], preferred_element_type=jnp.float32)
    h = jnp.maximum(h + b1_ref[...], 0.0)

    # Partial fc2 contribution of this d_ff chunk, accumulated in f32.
    acc_ref[...] += jnp.dot(h.astype(w2_ref.dtype), w2_ref[...],
                            preferred_element_type=jnp.float32)

    @pl.when(j == pl.num_programs(1) - 1)
    def _():
        o_ref[...] = (acc_ref[...] + b2_ref[...]).astype(o_ref.dtype)


def position_wise_ffn(x, w1, b1, w2, b2, *, tm=256, tn=512,
                      compute_dtype=jnp.bfloat16):
    """x: (B, S, d_model); w1: (d_model, d_ff); b1: (d_ff,);
    w2: (d_ff, d_model); b2: (d_model,). Returns (B, S, d_model)."""
    B, S, d_model = x.shape
    d_ff = w1.shape[1]
    M = B * S

    # Tile sizes & padded extents (clamp tiles for tiny inputs).
    tm_eff = min(tm, _round_up(M, 8))
    M_p = _round_up(M, tm_eff)
    tn_eff = min(tn, _round_up(d_ff, 128))
    d_ff_p = _round_up(d_ff, tn_eff)

    # Pad + cast operands. Zero-padding d_ff is exact for this FFN; padded
    # rows are sliced off after the call.
    x2d = x.reshape(M, d_model).astype(compute_dtype)
    if M_p != M:
        x2d = jnp.pad(x2d, ((0, M_p - M), (0, 0)))
    w1c = w1.astype(compute_dtype)
    w2c = w2.astype(compute_dtype)
    b1f = b1.astype(jnp.float32)
    if d_ff_p != d_ff:
        w1c = jnp.pad(w1c, ((0, 0), (0, d_ff_p - d_ff)))
        w2c = jnp.pad(w2c, ((0, d_ff_p - d_ff), (0, 0)))
        b1f = jnp.pad(b1f, (0, d_ff_p - d_ff))
    b1_2d = b1f.reshape(1, d_ff_p)
    b2_2d = b2.astype(jnp.float32).reshape(1, d_model)

    grid = (M_p // tm_eff, d_ff_p // tn_eff)

    # Cost hint for XLA's scheduler around the custom call.
    cbytes = jnp.dtype(compute_dtype).itemsize
    obytes = jnp.dtype(x.dtype).itemsize
    cost = pl.CostEstimate(
        flops=4 * M_p * d_model * d_ff_p,
        transcendentals=0,
        bytes_accessed=(M_p * d_model * (cbytes + obytes)
                        + 2 * d_model * d_ff_p * cbytes * grid[0]
                        + 4 * (d_ff_p + d_model)),
    )

    # Resident VMEM: double-buffered in/out tiles + f32 accumulator + h.
    tile_bytes = (2 * (tm_eff * d_model * cbytes        # x tile
                       + d_model * tn_eff * cbytes      # W1 tile
                       + tn_eff * 4                     # b1 tile (f32)
                       + tn_eff * d_model * cbytes      # W2 tile
                       + d_model * 4                    # b2 tile (f32)
                       + tm_eff * d_model * obytes)     # out tile
                  + tm_eff * d_model * 4                # acc scratch
                  + tm_eff * tn_eff * 4)                # h intermediate
    vmem_limit = int(min(max(2 * tile_bytes, 16 * 1024 * 1024),
                         60 * 1024 * 1024))             # stay under v7x 64 MiB

    out2d = pl.pallas_call(
        ffn_kernel,
        out_shape=jax.ShapeDtypeStruct((M_p, d_model), x.dtype),
        grid_spec=pltpu.PrefetchScalarGridSpec(
            num_scalar_prefetch=0,
            grid=grid,
            in_specs=[
                pl.BlockSpec((tm_eff, d_model), lambda i, j: (i, 0)),   # x rows
                pl.BlockSpec((d_model, tn_eff), lambda i, j: (0, j)),   # W1 cols
                pl.BlockSpec((1, tn_eff), lambda i, j: (0, j)),         # b1
                pl.BlockSpec((tn_eff, d_model), lambda i, j: (j, 0)),   # W2 rows
                pl.BlockSpec((1, d_model), lambda i, j: (0, 0)),        # b2
            ],
            out_specs=pl.BlockSpec((tm_eff, d_model), lambda i, j: (i, 0)),
            scratch_shapes=[pltpu.VMEM((tm_eff, d_model), jnp.float32)],
        ),
        compiler_params=pltpu.CompilerParams(
            dimension_semantics=("parallel", "arbitrary"),
            vmem_limit_bytes=vmem_limit,
        ),
        cost_estimate=cost,
    )(x2d, w1c, b1_2d, w2c, b2_2d)

    return out2d[:M].reshape(B, S, d_model)


def init_params(key, d_model, d_ff, dtype=jnp.float32):
    """Deterministic PyTorch-Linear-style init: U(-1/sqrt(fan_in), 1/sqrt(fan_in)).
    Weights are already transposed to (in, out) layout."""
    k1, k2, k3, k4 = jax.random.split(key, 4)
    bound1 = 1.0 / jnp.sqrt(d_model)
    bound2 = 1.0 / jnp.sqrt(d_ff)
    w1 = jax.random.uniform(k1, (d_model, d_ff), dtype, -bound1, bound1)
    b1 = jax.random.uniform(k2, (d_ff,), dtype, -bound1, bound1)
    w2 = jax.random.uniform(k3, (d_ff, d_model), dtype, -bound2, bound2)
    b2 = jax.random.uniform(k4, (d_model,), dtype, -bound2, bound2)
    return w1, b1, w2, b2


if __name__ == "__main__":
    # Small shapes consistent with the module's forward (scaled-down d_model /
    # d_ff). S=10 and d_ff=320 deliberately exercise the row and d_ff padding
    # paths; tn=128 exercises the multi-step d_ff reduction at this size.
    B, S, d_model, d_ff = 2, 10, 128, 320

    key = jax.random.PRNGKey(0)
    kx, kp = jax.random.split(key)
    x = jax.random.normal(kx, (B, S, d_model), dtype=jnp.float32)
    w1, b1, w2, b2 = init_params(kp, d_model, d_ff)

    out = position_wise_ffn(x, w1, b1, w2, b2, tn=128)
    out = jax.block_until_ready(out)

    # Pure-JAX f32 reference; bf16 matmul operands -> relaxed tolerance.
    ref = jnp.maximum(x @ w1 + b1, 0.0) @ w2 + b2
    assert out.shape == (B, S, d_model)
    assert jnp.allclose(out, ref, atol=2e-2, rtol=2e-2), (
        float(jnp.max(jnp.abs(out - ref))))

    print("KERNEL_OK")
</pallas_src>

<mosaic_0001>
module attributes {stable_mosaic.version = 11 : i64} {
  func.func @ffn_kernel(%arg0: i32, %arg1: i32, %arg2: memref<24x128xbf16, #tpu.memory_space<vmem>>, %arg3: memref<128x128xbf16, #tpu.memory_space<vmem>>, %arg4: memref<1x128xf32, #tpu.memory_space<vmem>>, %arg5: memref<128x128xbf16, #tpu.memory_space<vmem>>, %arg6: memref<1x128xf32, #tpu.memory_space<vmem>>, %arg7: memref<24x128xf32, #tpu.memory_space<vmem>>, %arg8: memref<24x128xf32, #tpu.memory_space<vmem>>) attributes {dimension_semantics = [#tpu.dimension_semantics<parallel>, #tpu.dimension_semantics<arbitrary>], iteration_bounds = array<i64: 1, 3>, scalar_prefetch = 0 : i64, scratch_operands = 1 : i64, tpu.core_type = #tpu.core_type<tc>, window_params = [{transform_indices = @transform_0, window_bounds = array<i64: 24, 128>}, {transform_indices = @transform_1, window_bounds = array<i64: 128, 128>}, {transform_indices = @transform_2, window_bounds = array<i64: 1, 128>}, {transform_indices = @transform_3, window_bounds = array<i64: 128, 128>}, {pipeline_mode = #tpu.pipeline_mode<synchronous>, transform_indices = @transform_4, window_bounds = array<i64: 1, 128>}, {transform_indices = @transform_5, window_bounds = array<i64: 24, 128>}]} {
    %c0_i32 = arith.constant 0 : i32
    %0 = arith.cmpi eq, %arg1, %c0_i32 : i32
    %1 = arith.extui %0 : i1 to i32
    %c0_i32_0 = arith.constant 0 : i32
    %2 = arith.cmpi ne, %1, %c0_i32_0 : i32
    scf.if %2 {
      %cst_15 = arith.constant 0.000000e+00 : f32
      %20 = vector.broadcast %cst_15 : f32 to vector<24x128xf32>
      %c0_16 = arith.constant 0 : index
      %c0_17 = arith.constant 0 : index
      %21 = vector.load %arg8[%c0_16, %c0_17] : memref<24x128xf32, #tpu.memory_space<vmem>>, vector<24x128xf32>
      tpu.vector_store %arg8[%c0_16, %c0_17], %20 {strides = array<i32>} : memref<24x128xf32, #tpu.memory_space<vmem>>, vector<24x128xf32>,
    } else {
    }
    %c0 = arith.constant 0 : index
    %c0_1 = arith.constant 0 : index
    %3 = vector.load %arg2[%c0, %c0_1] : memref<24x128xbf16, #tpu.memory_space<vmem>>, vector<24x128xbf16>
    %c0_2 = arith.constant 0 : index
    %c0_3 = arith.constant 0 : index
    %4 = vector.load %arg3[%c0_2, %c0_3] : memref<128x128xbf16, #tpu.memory_space<vmem>>, vector<128x128xbf16>
    %cst = arith.constant dense<0.000000e+00> : vector<24x128xf32>
    %5 = tpu.matmul %3, %4, %cst {dimension_numbers = #tpu.dot_dimension_numbers<[1], [0], [0], [1], [0, 0, 1, 1], [], []>} : vector<24x128xbf16>, vector<128x128xbf16>, vector<24x128xf32> -> vector<24x128xf32>
    %c0_4 = arith.constant 0 : index
    %c0_5 = arith.constant 0 : index
    %6 = vector.load %arg4[%c0_4, %c0_5] : memref<1x128xf32, #tpu.memory_space<vmem>>, vector<1x128xf32>
    %7 = vector.broadcast %6 : vector<1x128xf32> to vector<24x128xf32>
    %8 = arith.addf %5, %7 : vector<24x128xf32>
    %cst_6 = arith.constant 0.000000e+00 : f32
    %9 = vector.broadcast %cst_6 : f32 to vector<24x128xf32>
    %10 = arith.maximumf %8, %9 : vector<24x128xf32>
    %c0_7 = arith.constant 0 : index
    %c0_8 = arith.constant 0 : index
    %11 = vector.load %arg8[%c0_7, %c0_8] : memref<24x128xf32, #tpu.memory_space<vmem>>, vector<24x128xf32>
    %12 = arith.truncf %10 : vector<24x128xf32> to vector<24x128xbf16>
    %c0_9 = arith.constant 0 : index
    %c0_10 = arith.constant 0 : index
    %13 = vector.load %arg5[%c0_9, %c0_10] : memref<128x128xbf16, #tpu.memory_space<vmem>>, vector<128x128xbf16>
    %cst_11 = arith.constant dense<0.000000e+00> : vector<24x128xf32>
    %14 = tpu.matmul %12, %13, %cst_11 {dimension_numbers = #tpu.dot_dimension_numbers<[1], [0], [0], [1], [0, 0, 1, 1], [], []>} : vector<24x128xbf16>, vector<128x128xbf16>, vector<24x128xf32> -> vector<24x128xf32>
    %15 = arith.addf %11, %14 : vector<24x128xf32>
    %c0_12 = arith.constant 0 : index
    %c0_13 = arith.constant 0 : index
    %16 = vector.load %arg8[%c0_12, %c0_13] : memref<24x128xf32, #tpu.memory_space<vmem>>, vector<24x128xf32>
    tpu.vector_store %arg8[%c0_12, %c0_13], %15 {strides = array<i32>} : memref<24x128xf32, #tpu.memory_space<vmem>>, vector<24x128xf32>,
    %c2_i32 = arith.constant 2 : i32
    %17 = arith.cmpi eq, %arg1, %c2_i32 : i32
    %18 = arith.extui %17 : i1 to i32
    %c0_i32_14 = arith.constant 0 : i32
    %19 = arith.cmpi ne, %18, %c0_i32_14 : i32
    scf.if %19 {
      %c0_15 = arith.constant 0 : index
      %c0_16 = arith.constant 0 : index
      %20 = vector.load %arg8[%c0_15, %c0_16] : memref<24x128xf32, #tpu.memory_space<vmem>>, vector<24x128xf32>
      %c0_17 = arith.constant 0 : index
      %c0_18 = arith.constant 0 : index
      %21 = vector.load %arg6[%c0_17, %c0_18] : memref<1x128xf32, #tpu.memory_space<vmem>>, vector<1x128xf32>
      %22 = vector.broadcast %21 : vector<1x128xf32> to vector<24x128xf32>
      %23 = arith.addf %20, %22 : vector<24x128xf32>
      %c0_19 = arith.constant 0 : index
      %c0_20 = arith.constant 0 : index
      %24 = vector.load %arg7[%c0_19, %c0_20] : memref<24x128xf32, #tpu.memory_space<vmem>>, vector<24x128xf32>
      tpu.vector_store %arg7[%c0_19, %c0_20], %23 {strides = array<i32>} : memref<24x128xf32, #tpu.memory_space<vmem>>, vector<24x128xf32>,
    } else {
    }
    return
  }
  func.func @transform_0(%arg0: i32, %arg1: i32) -> (i32, i32) {
    %c0_i32 = arith.constant 0 : i32
    %c0_i32_0 = arith.constant 0 : i32
    return %arg0, %c0_i32 : i32, i32
  }
  func.func @transform_1(%arg0: i32, %arg1: i32) -> (i32, i32) {
    %c0_i32 = arith.constant 0 : i32
    %c0_i32_0 = arith.constant 0 : i32
    return %c0_i32, %arg1 : i32, i32
  }
  func.func @transform_2(%arg0: i32, %arg1: i32) -> (i32, i32) {
    %c0_i32 = arith.constant 0 : i32
    %c0_i32_0 = arith.constant 0 : i32
    return %c0_i32, %arg1 : i32, i32
  }
  func.func @transform_3(%arg0: i32, %arg1: i32) -> (i32, i32) {
    %c0_i32 = arith.constant 0 : i32
    %c0_i32_0 = arith.constant 0 : i32
    return %arg1, %c0_i32 : i32, i32
  }
  func.func @transform_4(%arg0: i32, %arg1: i32) -> (i32, i32) {
    %c0_i32 = arith.constant 0 : i32
    %c0_i32_0 = arith.constant 0 : i32
    %c0_i32_1 = arith.constant 0 : i32
    return %c0_i32, %c0_i32_0 : i32, i32
  }
  func.func @transform_5(%arg0: i32, %arg1: i32) -> (i32, i32) {
    %c0_i32 = arith.constant 0 : i32
    %c0_i32_0 = arith.constant 0 : i32
    return %arg0, %c0_i32 : i32, i32
  }
}

</mosaic_0001>

<llo_original>
// kernel: tpu_custom_call.1
$region0: #{tpu_custom_call.1}
  #allocation0 [shape = 'u32[]', space=smem, size = 0x4, offset = 0x4, fixed_abs, tag = 'smem constant byte address 0x4 - core index']
  #allocation1 [shape = 'u32[144,128]{1,0:T(1,128)}', space=vmem, size = 0x12000, scoped, tag = 'internal scratch']
  #allocation2 [shape = 'f32[24,128]{1,0:T(8,128)}', space=vmem, size = 0x3000, scoped, tag = 'scratch operand']
  %s0 = inlined_call_operand.hbm [shape: bf16[24,128], index: 0, kind: input, shape index: {}]
  %s1 = inlined_call_operand.hbm [shape: bf16[128,384], index: 1, kind: input, shape index: {}]
  %s2 = inlined_call_operand.vmem [shape: f32[1,384], index: 2, kind: input, shape index: {}]
  %s3 = inlined_call_operand.hbm [shape: bf16[384,128], index: 3, kind: input, shape index: {}]
  %s4 = inlined_call_operand.vmem [shape: f32[1,128], index: 4, kind: input, shape index: {}]
  %s5 = inlined_call_operand.hbm [shape: f32[24,128], index: 5, kind: output, shape index: {}]
  %s6 = sld [smem:[#allocation0]]
  $region73: #{tpu_custom_call.1} parent=0
    _
  %s8 = ssub.s32 1, %s6
  %s9 = scalar_select 0, %s8, %s6
  $region1: #{tpu_custom_call.1} parent=0
    #allocation3 [shape = 'u8[6144]{0}', space=vmem, size = 0x1800, scoped, tag = 'input window, operand 0, single buffered']
    #allocation4 [shape = 's32[2]{0}', space=sflag, size = 0x8, scoped, tag = 'scoped memory for tpu_custom_call.1']
    #allocation5 [shape = 's32[2]{0}', space=sflag, size = 0x8, scoped, tag = 'scoped memory for tpu_custom_call.1']
    #allocation6 [shape = 'u8[65536]{0}', space=vmem, size = 0x10000, scoped, tag = 'input window, operand 1']
    #allocation7 [shape = 's32[2]{0}', space=sflag, size = 0x8, scoped, tag = 'scoped memory for tpu_custom_call.1']
    #allocation8 [shape = 'u8[65536]{0}', space=vmem, size = 0x10000, scoped, tag = 'input window, operand 3']
    #allocation9 [shape = 'u8[12288]{0}', space=vmem, size = 0x3000, scoped, tag = 'output window, operand 0, single buffered']
    %10 = vsyncpa [#allocation4], 0
    %11 = vsyncpa [#allocation7], 0
    %s12 = scalar_lea.sflag [#allocation7], 1
    %13 = vsyncpa %s12, 0
    %14 = vsyncpa [#allocation5], 0
    loop: start=0, step=1, limit=5
    $region2: #{tpu_custom_call.1} parent=1 // loop_pre_header
      _
    $region3: #{tpu_custom_call.1} parent=1 // loop_header
      %s16 = sphi 0, %s20
      %p17 = scmp.ge.s32.totalorder %s16, 5
      %s23 = sphi 0, %s35
      %s24 = sphi 0, %s31
      %s25 = sphi 0, %s23
      %s26 = sphi 0, %s24
      %s27 = sphi 0, %s25
      %s28 = sphi 0, %s26
      %s38 = sphi 0, %s40
      %s41 = sphi 0, %s38
      %s42 = sphi 0, %s41
      %s58 = sphi 0, %s42
      %s64 = sphi 0, %s66
      %s67 = sphi 0, %s64
      %s68 = sphi 0, %s67
      %s84 = sphi 0, %s68
      %s90 = sphi 0, %s92
      %s93 = sphi 0, %s90
      %s94 = sphi 0, %s93
      %s110 = sphi 0, %s94
      %s116 = sphi 0, %s118
      %s119 = sphi 0, %s116
      %s120 = sphi 0, %s119
      %s136 = sphi 0, %s120
      %s140 = sphi 0, %s140
      %s142 = sphi 0, %s140
      %s143 = sphi 0, %s142
      %s157 = sphi 0, %s143
      %s163 = sphi 0, %s165
      %s166 = sphi 0, %s163
      %s167 = sphi 0, %s166
      %s183 = sphi 0, %s167
    $region4: #{tpu_custom_call.1} parent=1 // loop_header_branch
      %19 = sbr.rel (%p17) target = $region8
    $region5: #{tpu_custom_call.1} parent=1 // loop_body
      %s21 = ssub.s32 %s16, 1
      %s22 = ssub.s32 %s16, 2
      %s29 = sadd.s32 1, %s24
      %p30 = scmp.ge.s32.totalorder %s29, 3
      %s31 = scalar_select %p30, 0, %s29
      %s32 = sadd.s32 1, %s23
      %s33 = scalar_select %p30, %s32, %s23
      %p34 = scmp.ge.s32.totalorder %s33, 1
      %s35 = scalar_select %p34, 0, %s33
      %s36 = ssub.s32 %s23, %s35
      %p37 = scmp.eq.s32.totalorder %s36, 0
      %s39 = sadd.s32 %s38, 1
      %s40 = scalar_select %p37, %s38, %s39
      %p43 = pneg %p37
      %p44 = scmp.eq.s32.totalorder %s16, 2
      %p45 = por %p43, %p44
      %p46 = scmp.ne.s32.totalorder %s38, %s41
      %p47 = scmp.eq.s32.totalorder %s16, 0
      %p48 = por %p46, %p47
      %p49 = scmp.ne.s32.totalorder %s38, %s41
      %p50 = scmp.eq.s32.totalorder %s21, 2
      %p51 = por %p49, %p50
      %p52 = scmp.ne.s32.totalorder %s41, %s42
      %p53 = scmp.eq.s32.totalorder %s21, 0
      %p54 = por %p52, %p53
      %p55 = scmp.ne.s32.totalorder %s41, %s42
      %p56 = scmp.eq.s32.totalorder %s22, 2
      %p57 = por %p55, %p56
      %p59 = scmp.ne.s32.totalorder %s42, %s58
      %p60 = scmp.eq.s32.totalorder %s22, 0
      %p61 = por %p59, %p60
      %s62 = ssub.s32 %s24, %s31
      %p63 = scmp.eq.s32.totalorder %s62, 0
      %s65 = sadd.s32 %s64, 1
      %s66 = scalar_select %p63, %s64, %s65
      %p69 = pneg %p63
      %p70 = scmp.eq.s32.totalorder %s16, 2
      %p71 = por %p69, %p70
      %p72 = scmp.ne.s32.totalorder %s64, %s67
      %p73 = scmp.eq.s32.totalorder %s16, 0
      %p74 = por %p72, %p73
      %p75 = scmp.ne.s32.totalorder %s64, %s67
      %p76 = scmp.eq.s32.totalorder %s21, 2
      %p77 = por %p75, %p76
      %p78 = scmp.ne.s32.totalorder %s67, %s68
      %p79 = scmp.eq.s32.totalorder %s21, 0
      %p80 = por %p78, %p79
      %p81 = scmp.ne.s32.totalorder %s67, %s68
      %p82 = scmp.eq.s32.totalorder %s22, 2
      %p83 = por %p81, %p82
      %p85 = scmp.ne.s32.totalorder %s68, %s84
      %p86 = scmp.eq.s32.totalorder %s22, 0
      %p87 = por %p85, %p86
      %s88 = ssub.s32 %s24, %s31
      %p89 = scmp.eq.s32.totalorder %s88, 0
      %s91 = sadd.s32 %s90, 1
      %s92 = scalar_select %p89, %s90, %s91
      %p95 = pneg %p89
      %p96 = scmp.eq.s32.totalorder %s16, 2
      %p97 = por %p95, %p96
      %p98 = scmp.ne.s32.totalorder %s90, %s93
      %p99 = scmp.eq.s32.totalorder %s16, 0
      %p100 = por %p98, %p99
      %p101 = scmp.ne.s32.totalorder %s90, %s93
      %p102 = scmp.eq.s32.totalorder %s21, 2
      %p103 = por %p101, %p102
      %p104 = scmp.ne.s32.totalorder %s93, %s94
      %p105 = scmp.eq.s32.totalorder %s21, 0
      %p106 = por %p104, %p105
      %p107 = scmp.ne.s32.totalorder %s93, %s94
      %p108 = scmp.eq.s32.totalorder %s22, 2
      %p109 = por %p107, %p108
      %p111 = scmp.ne.s32.totalorder %s94, %s110
      %p112 = scmp.eq.s32.totalorder %s22, 0
      %p113 = por %p111, %p112
      %s114 = ssub.s32 %s24, %s31
      %p115 = scmp.eq.s32.totalorder %s114, 0
      %s117 = sadd.s32 %s116, 1
      %s118 = scalar_select %p115, %s116, %s117
      %p121 = pneg %p115
      %p122 = scmp.eq.s32.totalorder %s16, 2
      %p123 = por %p121, %p122
      %p124 = scmp.ne.s32.totalorder %s116, %s119
      %p125 = scmp.eq.s32.totalorder %s16, 0
      %p126 = por %p124, %p125
      %p127 = scmp.ne.s32.totalorder %s116, %s119
      %p128 = scmp.eq.s32.totalorder %s21, 2
      %p129 = por %p127, %p128
      %p130 = scmp.ne.s32.totalorder %s119, %s120
      %p131 = scmp.eq.s32.totalorder %s21, 0
      %p132 = por %p130, %p131
      %p133 = scmp.ne.s32.totalorder %s119, %s120
      %p134 = scmp.eq.s32.totalorder %s22, 2
      %p135 = por %p133, %p134
      %p137 = scmp.ne.s32.totalorder %s120, %s136
      %p138 = scmp.eq.s32.totalorder %s22, 0
      %p139 = por %p137, %p138
      %s141 = sadd.s32 %s140, 1
      %p144 = scmp.eq.s32.totalorder %s16, 2
      %p145 = scmp.ne.s32.totalorder %s140, %s142
      %p146 = scmp.eq.s32.totalorder %s16, 0
      %p147 = por %p145, %p146
      %p148 = scmp.ne.s32.totalorder %s140, %s142
      %p149 = scmp.eq.s32.totalorder %s21, 2
      %p150 = por %p148, %p149
      %p151 = scmp.ne.s32.totalorder %s142, %s143
      %p152 = scmp.eq.s32.totalorder %s21, 0
      %p153 = por %p151, %p152
      %p154 = scmp.ne.s32.totalorder %s142, %s143
      %p155 = scmp.eq.s32.totalorder %s22, 2
      %p156 = por %p154, %p155
      %p158 = scmp.ne.s32.totalorder %s143, %s157
      %p159 = scmp.eq.s32.totalorder %s22, 0
      %p160 = por %p158, %p159
      %s161 = ssub.s32 %s23, %s35
      %p162 = scmp.eq.s32.totalorder %s161, 0
      %s164 = sadd.s32 %s163, 1
      %s165 = scalar_select %p162, %s163, %s164
      %p168 = pneg %p162
      %p169 = scmp.eq.s32.totalorder %s16, 2
      %p170 = por %p168, %p169
      %p171 = scmp.ne.s32.totalorder %s163, %s166
      %p172 = scmp.eq.s32.totalorder %s16, 0
      %p173 = por %p171, %p172
      %p174 = scmp.ne.s32.totalorder %s163, %s166
      %p175 = scmp.eq.s32.totalorder %s21, 2
      %p176 = por %p174, %p175
      %p177 = scmp.ne.s32.totalorder %s166, %s167
      %p178 = scmp.eq.s32.totalorder %s21, 0
      %p179 = por %p177, %p178
      %p180 = scmp.ne.s32.totalorder %s166, %s167
      %p181 = scmp.eq.s32.totalorder %s22, 2
      %p182 = por %p180, %p181
      %p184 = scmp.ne.s32.totalorder %s167, %s183
      %p185 = scmp.eq.s32.totalorder %s22, 0
      %p186 = por %p184, %p185
      %p187 = scmp.le.s32.totalorder 1, %s16
      %p188 = scmp.lt.s32.totalorder %s16, 4
      %p189 = pnand %p187, %p188
      %p190 = pneg %p189
      // Predicated region
      $region9: #{tpu_custom_call.1} parent=5 // pred_check
        _
      $region10: #{tpu_custom_call.1} parent=5 // pred_check_branch
        %192 = sbr.rel (%p189) target = $region12
      $region11: #{tpu_custom_call.1} parent=5 // pred_region
        %s193 = ssub.s32 %s16, 1
        // Predicated region
        $region13: #{tpu_custom_call.1} parent=11 // pred_check
          %p194 = pneg %p54
        $region14: #{tpu_custom_call.1} parent=11 // pred_check_branch
          %196 = sbr.rel (%p194) target = $region16
        $region15: #{tpu_custom_call.1} parent=11 // pred_region
          %s197 = smul.u32 3, %s25
          %s199 = ssub.s32 192, 192
          %200 = vsyncadd [#allocation4], %s199
          %s201 = smul.addr %s197, 64
          %s202 = scalar_lea.hbm %s0, %s201
          %s203 = sshll.u32 [#allocation3], 4
          %s204 = int_to_ptr.vmem [resolvable:$true] %s203
          %209 = dma.hbm_to_vmem [thread:$0]  %s202, 192, %s204, [#allocation4], 64, 64, 4
        $region16: #{tpu_custom_call.1} parent=11 // pred_fallthru
          _
        // Predicated region
        $region17: #{tpu_custom_call.1} parent=11 // pred_check
          %p210 = pneg %p153
        $region18: #{tpu_custom_call.1} parent=11 // pred_check_branch
          %212 = sbr.rel (%p210) target = $region20
        $region19: #{tpu_custom_call.1} parent=11 // pred_region
          _
        $region20: #{tpu_custom_call.1} parent=11 // pred_fallthru
          _
      $region12: #{tpu_custom_call.1} parent=5 // pred_fallthru
        _
      %p213 = scmp.lt.s32.totalorder %s16, 3
      // Predicated region
      $region21: #{tpu_custom_call.1} parent=5 // pred_check
        %p214 = pneg %p213
      $region22: #{tpu_custom_call.1} parent=5 // pred_check_branch
        %216 = sbr.rel (%p214) target = $region24
      $region23: #{tpu_custom_call.1} parent=5 // pred_region
        // Predicated region
        $region25: #{tpu_custom_call.1} parent=23 // pred_check
          %p217 = pneg %p74
        $region26: #{tpu_custom_call.1} parent=23 // pred_check_branch
          %219 = sbr.rel (%p217) target = $region28
        $region27: #{tpu_custom_call.1} parent=23 // pred_region
          %s220 = sand.u32 %s16, 1
          %s221 = scalar_lea.sflag [#allocation7], %s220
          %s222 = sand.u32 %s64, 1
          %s223 = smul.addr %s222, 64
          %s224 = scalar_lea.vmem [#allocation6], %s223
          %s226 = ssub.s32 1024, 1024
          %227 = vsyncadd %s221, %s226
          %s228 = smul.addr %s24, 64
          %s229 = scalar_lea.hbm %s1, %s228
          %s230 = sshll.u32 %s224, 4
          %s231 = int_to_ptr.vmem [resolvable:$true] %s230
          %236 = dma.hbm_to_vmem [thread:$0]  %s229, 1024, %s231, %s221, 192, 64, 4
        $region28: #{tpu_custom_call.1} parent=23 // pred_fallthru
          _
        // Predicated region
        $region29: #{tpu_custom_call.1} parent=23 // pred_check
          %p237 = pneg %p100
        $region30: #{tpu_custom_call.1} parent=23 // pred_check_branch
          %239 = sbr.rel (%p237) target = $region32
        $region31: #{tpu_custom_call.1} parent=23 // pred_region
          %p240 = scmp.lt.s32.totalorder %s24, 2
          %s241 = scalar_select %p240, %s24, 2
          %s242 = scalar_lea.vmem %s2, %s241
        $region32: #{tpu_custom_call.1} parent=23 // pred_fallthru
          _
        // Predicated region
        $region33: #{tpu_custom_call.1} parent=23 // pred_check
          %p243 = pneg %p126
        $region34: #{tpu_custom_call.1} parent=23 // pred_check_branch
          %245 = sbr.rel (%p243) target = $region36
        $region35: #{tpu_custom_call.1} parent=23 // pred_region
          %s246 = sand.u32 %s16, 1
          %s247 = scalar_lea.sflag [#allocation7], %s246
          %s248 = sand.u32 %s116, 1
          %s249 = smul.addr %s248, 64
          %s250 = scalar_lea.vmem [#allocation8], %s249
          %s251 = smul.u32 16, %s24
          %s253 = ssub.s32 1024, 1024
          %254 = vsyncadd %s247, %s253
          %s255 = smul.addr %s251, 64
          %s256 = scalar_lea.hbm %s3, %s255
          %s257 = sshll.u32 %s250, 4
          %s258 = int_to_ptr.vmem [resolvable:$true] %s257
          %263 = dma.hbm_to_vmem [thread:$0]  %s256, 1024, %s258, %s247, 64, 64, 4
        $region36: #{tpu_custom_call.1} parent=23 // pred_fallthru
          _
      $region24: #{tpu_custom_call.1} parent=5 // pred_fallthru
        _
      %p264 = scmp.le.s32.totalorder 1, %s16
      %p265 = scmp.lt.s32.totalorder %s16, 4
      %p266 = pnand %p264, %p265
      %p267 = pneg %p266
      // Predicated region
      $region37: #{tpu_custom_call.1} parent=5 // pred_check
        _
      $region38: #{tpu_custom_call.1} parent=5 // pred_check_branch
        %269 = sbr.rel (%p266) target = $region40
      $region39: #{tpu_custom_call.1} parent=5 // pred_region
        %s270 = ssub.s32 %s16, 1
        // Predicated region
        $region41: #{tpu_custom_call.1} parent=39 // pred_check
          %p271 = pneg %p54
        $region42: #{tpu_custom_call.1} parent=39 // pred_check_branch
          %273 = sbr.rel (%p271) target = $region44
        $region43: #{tpu_custom_call.1} parent=39 // pred_region
          %274 = dma.done [#allocation4], 192
        $region44: #{tpu_custom_call.1} parent=39 // pred_fallthru
          _
        %s275 = sand.u32 %s21, 1
        %s276 = scalar_lea.sflag [#allocation7], %s275
        %s277 = sand.u32 %s67, 1
        %s278 = smul.addr %s277, 64
        %s279 = scalar_lea.vmem [#allocation6], %s278
        // Predicated region
        $region45: #{tpu_custom_call.1} parent=39 // pred_check
          %p280 = pneg %p80
        $region46: #{tpu_custom_call.1} parent=39 // pred_check_branch
          %282 = sbr.rel (%p280) target = $region48
        $region47: #{tpu_custom_call.1} parent=39 // pred_region
          %283 = dma.done %s276, 1024
        $region48: #{tpu_custom_call.1} parent=39 // pred_fallthru
          _
        %s284 = sand.u32 %s21, 1
        %s285 = scalar_lea.sflag [#allocation7], %s284
        %s286 = sand.u32 %s119, 1
        %s287 = smul.addr %s286, 64
        %s288 = scalar_lea.vmem [#allocation8], %s287
        // Predicated region
        $region49: #{tpu_custom_call.1} parent=39 // pred_check
          %p289 = pneg %p132
        $region50: #{tpu_custom_call.1} parent=39 // pred_check_branch
          %291 = sbr.rel (%p289) target = $region52
        $region51: #{tpu_custom_call.1} parent=39 // pred_region
          %292 = dma.done %s285, 1024
        $region52: #{tpu_custom_call.1} parent=39 // pred_fallthru
          _
        %p293 = pneg %p54
        %p294 = pneg %p51
        %s295 = sand.u32 %s21, 1
        %s296 = scalar_lea.sflag [#allocation7], %s295
        %s297 = sand.u32 %s67, 1
        %s298 = smul.addr %s297, 64
        %s299 = scalar_lea.vmem [#allocation6], %s298
        %p300 = pneg %p80
        %p301 = pneg %p77
        %p302 = scmp.lt.s32.totalorder %s26, 2
        %s303 = scalar_select %p302, %s26, 2
        %s304 = scalar_lea.vmem %s2, %s303
        %p305 = pneg %p106
        %p306 = pneg %p103
        %s307 = sand.u32 %s21, 1
        %s308 = scalar_lea.sflag [#allocation7], %s307
        %s309 = sand.u32 %s119, 1
        %s310 = smul.addr %s309, 64
        %s311 = scalar_lea.vmem [#allocation8], %s310
        %p312 = pneg %p132
        %p313 = pneg %p129
        %p314 = pneg %p153
        %p315 = pneg %p150
        %p316 = pneg %p179
        %p317 = pneg %p176
        %s318 = smul.u32 3, %s25
        %p319 = scmp.lt.s32.totalorder %s26, 2
        %s320 = scalar_select %p319, %s26, 2
        %s321 = scalar_lea.vmem %s2, %s320
        %s322 = smul.u32 16, %s26
        %s323 = smul.u32 3, %s25
        %p325 = scmp.eq.s32.totalorder %s26, 0
        // Predicated region
        $region53: #{tpu_custom_call.1} parent=39 // pred_check
          %p326 = pneg %p325
        $region54: #{tpu_custom_call.1} parent=39 // pred_check_branch
          %328 = sbr.rel (%p326) target = $region56
        $region55: #{tpu_custom_call.1} parent=39 // pred_region
          %329 = vst [vmem:[#allocation2] sm:$0xff] 0.0
          %330 = vst [vmem:[#allocation2 + $0x8] sm:$0xff] 0.0
          %331 = vst [vmem:[#allocation2 + $0x10] sm:$0xff] 0.0
        $region56: #{tpu_custom_call.1} parent=39 // pred_fallthru
          _
        %v332 = vld [vmem:[#allocation3] sm:$0xf]
        %v333 = vld [vmem:[#allocation3 + $0x4] sm:$0xf]
        %v334 = vld [vmem:[#allocation3 + $0x8] sm:$0xf]
        %v335 = vld [vmem:[%s279] sm:$0xf]
        %v336 = vld [vmem:[%s279 + $0x4] sm:$0xf]
        %v337 = vld [vmem:[%s279 + $0x8] sm:$0xf]
        %v338 = vld [vmem:[%s279 + $0xc] sm:$0xf]
        %v339 = vld [vmem:[%s279 + $0x10] sm:$0xf]
        %v340 = vld [vmem:[%s279 + $0x14] sm:$0xf]
        %v341 = vld [vmem:[%s279 + $0x18] sm:$0xf]
        %v342 = vld [vmem:[%s279 + $0x1c] sm:$0xf]
        %v343 = vld [vmem:[%s279 + $0x20] sm:$0xf]
        %v344 = vld [vmem:[%s279 + $0x24] sm:$0xf]
        %v345 = vld [vmem:[%s279 + $0x28] sm:$0xf]
        %v346 = vld [vmem:[%s279 + $0x2c] sm:$0xf]
        %v347 = vld [vmem:[%s279 + $0x30] sm:$0xf]
        %v348 = vld [vmem:[%s279 + $0x34] sm:$0xf]
        %v349 = vld [vmem:[%s279 + $0x38] sm:$0xf]
        %v350 = vld [vmem:[%s279 + $0x3c] sm:$0xf]
        %v351 = vld [vmem:[%s321] sm:$0x1]
        %v353 = vlaneseq
        %v354 = vshrl.u32 %v353, 7
        %v355 = vsub.s32 0, %v354
        %v356 = vrot.slane %v351, %v355
        %v361 = vunpack.c.l.b16 %v332
        %v362 = vunpack.c.l.b16 %v333
        %v363 = vunpack.c.l.b16 %v334
        %v364 = vpack.c.b16 %v362, %v361
        %v365 = vpack.c.b16 %v363, %v363
        %v384 = vunpack.c.l.b16 %v335
        %v385 = vunpack.c.l.b16 %v336
        %v386 = vunpack.c.l.b16 %v337
        %v387 = vunpack.c.l.b16 %v338
        %v388 = vunpack.c.l.b16 %v339
        %v389 = vunpack.c.l.b16 %v340
        %v390 = vunpack.c.l.b16 %v341
        %v391 = vunpack.c.l.b16 %v342
        %v392 = vunpack.c.l.b16 %v343
        %v393 = vunpack.c.l.b16 %v344
        %v394 = vunpack.c.l.b16 %v345
        %v395 = vunpack.c.l.b16 %v346
        %v396 = vunpack.c.l.b16 %v347
        %v397 = vunpack.c.l.b16 %v348
        %v398 = vunpack.c.l.b16 %v349
        %v399 = vunpack.c.l.b16 %v350
        %v400 = vpack.c.b16 %v385, %v384
        %v401 = vpack.c.b16 %v387, %v386
        %v402 = vpack.c.b16 %v389, %v388
        %v403 = vpack.c.b16 %v391, %v390
        %v404 = vpack.c.b16 %v393, %v392
        %v405 = vpack.c.b16 %v395, %v394
        %v406 = vpack.c.b16 %v397, %v396
        %v407 = vpack.c.b16 %v399, %v398
        %416 = vmatprep.subr.bf16.mxu0 0
        %417 = vmatpush1.bf16.msra.mxu0 %v400
        %418 = vmatprep.subr.bf16.mxu0 0
        %419 = vmatpush1.bf16.msra.mxu0 %v401
        %420 = vmatprep.subr.bf16.mxu0 0
        %421 = vmatpush1.bf16.msra.mxu0 %v402
        %422 = vmatprep.subr.bf16.mxu0 0
        %423 = vmatpush1.bf16.msra.mxu0 %v403
        %424 = vmatprep.subr.bf16.mxu0 0
        %425 = vmatpush1.bf16.msra.mxu0 %v404
        %426 = vmatprep.subr.bf16.mxu0 0
        %427 = vmatpush1.bf16.msra.mxu0 %v405
        %428 = vmatprep.subr.bf16.mxu0 0
        %429 = vmatpush1.bf16.msra.mxu0 %v406
        %430 = vmatprep.subr.bf16.mxu0 0
        %431 = vmatpush1.bf16.msra.mxu0 %v407
        %432 = vmatprep.subr.bf16.mxu0 0
        %433 = vmatpush1.bf16.msra.mxu0 0
        %434 = vmatprep.subr.bf16.mxu0 0
        %435 = vmatpush1.bf16.msra.mxu0 0
        %436 = vmatprep.subr.bf16.mxu0 0
        %437 = vmatpush1.bf16.msra.mxu0 0
        %438 = vmatprep.subr.bf16.mxu0 0
        %439 = vmatpush1.bf16.msra.mxu0 0
        %440 = vmatprep.subr.bf16.mxu0 0
        %441 = vmatpush1.bf16.msra.mxu0 0
        %442 = vmatprep.subr.bf16.mxu0 0
        %443 = vmatpush1.bf16.msra.mxu0 0
        %444 = vmatprep.subr.bf16.mxu0 0
        %445 = vmatpush1.bf16.msra.mxu0 0
        %446 = vmatprep.subr.bf16.mxu0 0
        %447 = vmatpush1.bf16.msra.mxu0 0
        %448 = vmatprep.mubr.bf16.mxu0 0
        %449 = vmatmul.mubr.bf16.gmra.mrb[0].mxu0 %v364
        %v450 = vpop.f32.mrb[0].mxu0
        %v451 = vadd.f32 %v356, %v450
        %v452 = vpop.f32.mrb[0].mxu0
        %v453 = vpop.f32.mrb[0].mxu0
        %v454 = vadd.f32 %v356, %v453
        %v455 = vpop.f32.mrb[0].mxu0
        %456 = vmatprep.mubr.bf16.mxu0 0
        %457 = vmatmul.mubr.bf16.gmra.mrb[0].mxu0 %v365
        %v458 = vpop.f32.mrb[0].mxu0
        %v459 = vadd.f32 %v356, %v458
        %v460 = vpop.f32.mrb[0].mxu0
        %v461 = vpop.f32.mrb[0].mxu0
        %v462 = vpop.f32.mrb[0].mxu0
        %463 = vdwg.mxu0
        %v464 = vmax.f32 %v451, 0.0
        %v465 = vmax.f32 %v454, 0.0
        %v466 = vmax.f32 %v459, 0.0
        %v467 = vld [vmem:[#allocation2] sm:$0xff]
        %v468 = vld [vmem:[#allocation2 + $0x8] sm:$0xff]
        %v469 = vld [vmem:[#allocation2 + $0x10] sm:$0xff]
        %v470 = vpack.c.bf16 %v465, %v464
        %v471 = vpack.c.bf16 %v466, %v466
        %v472 = vld [vmem:[%s288] sm:$0xf]
        %v473 = vld [vmem:[%s288 + $0x4] sm:$0xf]
        %v474 = vld [vmem:[%s288 + $0x8] sm:$0xf]
        %v475 = vld [vmem:[%s288 + $0xc] sm:$0xf]
        %v476 = vld [vmem:[%s288 + $0x10] sm:$0xf]
        %v477 = vld [vmem:[%s288 + $0x14] sm:$0xf]
        %v478 = vld [vmem:[%s288 + $0x18] sm:$0xf]
        %v479 = vld [vmem:[%s288 + $0x1c] sm:$0xf]
        %v480 = vld [vmem:[%s288 + $0x20] sm:$0xf]
        %v481 = vld [vmem:[%s288 + $0x24] sm:$0xf]
        %v482 = vld [vmem:[%s288 + $0x28] sm:$0xf]
        %v483 = vld [vmem:[%s288 + $0x2c] sm:$0xf]
        %v484 = vld [vmem:[%s288 + $0x30] sm:$0xf]
        %v485 = vld [vmem:[%s288 + $0x34] sm:$0xf]
        %v486 = vld [vmem:[%s288 + $0x38] sm:$0xf]
        %v487 = vld [vmem:[%s288 + $0x3c] sm:$0xf]
        %v504 = vunpack.c.l.b16 %v472
        %v505 = vunpack.c.l.b16 %v473
        %v506 = vunpack.c.l.b16 %v474
        %v507 = vunpack.c.l.b16 %v475
        %v508 = vunpack.c.l.b16 %v476
        %v509 = vunpack.c.l.b16 %v477
        %v510 = vunpack.c.l.b16 %v478
        %v511 = vunpack.c.l.b16 %v479
        %v512 = vunpack.c.l.b16 %v480
        %v513 = vunpack.c.l.b16 %v481
        %v514 = vunpack.c.l.b16 %v482
        %v515 = vunpack.c.l.b16 %v483
        %v516 = vunpack.c.l.b16 %v484
        %v517 = vunpack.c.l.b16 %v485
        %v518 = vunpack.c.l.b16 %v486
        %v519 = vunpack.c.l.b16 %v487
        %v520 = vpack.c.b16 %v505, %v504
        %v521 = vpack.c.b16 %v507, %v506
        %v522 = vpack.c.b16 %v509, %v508
        %v523 = vpack.c.b16 %v511, %v510
        %v524 = vpack.c.b16 %v513, %v512
        %v525 = vpack.c.b16 %v515, %v514
        %v526 = vpack.c.b16 %v517, %v516
        %v527 = vpack.c.b16 %v519, %v518
        %536 = vmatprep.subr.bf16.mxu0 0
        %537 = vmatpush1.bf16.msra.mxu0 %v520
        %538 = vmatprep.subr.bf16.mxu0 0
        %539 = vmatpush1.bf16.msra.mxu0 %v521
        %540 = vmatprep.subr.bf16.mxu0 0
        %541 = vmatpush1.bf16.msra.mxu0 %v522
        %542 = vmatprep.subr.bf16.mxu0 0
        %543 = vmatpush1.bf16.msra.mxu0 %v523
        %544 = vmatprep.subr.bf16.mxu0 0
        %545 = vmatpush1.bf16.msra.mxu0 %v524
        %546 = vmatprep.subr.bf16.mxu0 0
        %547 = vmatpush1.bf16.msra.mxu0 %v525
        %548 = vmatprep.subr.bf16.mxu0 0
        %549 = vmatpush1.bf16.msra.mxu0 %v526
        %550 = vmatprep.subr.bf16.mxu0 0
        %551 = vmatpush1.bf16.msra.mxu0 %v527
        %552 = vmatprep.subr.bf16.mxu0 0
        %553 = vmatpush1.bf16.msra.mxu0 0
        %554 = vmatprep.subr.bf16.mxu0 0
        %555 = vmatpush1.bf16.msra.mxu0 0
        %556 = vmatprep.subr.bf16.mxu0 0
        %557 = vmatpush1.bf16.msra.mxu0 0
        %558 = vmatprep.subr.bf16.mxu0 0
        %559 = vmatpush1.bf16.msra.mxu0 0
        %560 = vmatprep.subr.bf16.mxu0 0
        %561 = vmatpush1.bf16.msra.mxu0 0
        %562 = vmatprep.subr.bf16.mxu0 0
        %563 = vmatpush1.bf16.msra.mxu0 0
        %564 = vmatprep.subr.bf16.mxu0 0
        %565 = vmatpush1.bf16.msra.mxu0 0
        %566 = vmatprep.subr.bf16.mxu0 0
        %567 = vmatpush1.bf16.msra.mxu0 0
        %568 = vmatprep.mubr.bf16.mxu0 0
        %569 = vmatmul.mubr.bf16.gmra.mrb[0].mxu0 %v470
        %v570 = vpop.f32.mrb[0].mxu0
        %v571 = vadd.f32 0.0, %v570
        %v572 = vpop.f32.mrb[0].mxu0
        %v573 = vpop.f32.mrb[0].mxu0
        %v574 = vadd.f32 0.0, %v573
        %v575 = vpop.f32.mrb[0].mxu0
        %576 = vmatprep.mubr.bf16.mxu0 0
        %577 = vmatmul.mubr.bf16.gmra.mrb[0].mxu0 %v471
        %v578 = vpop.f32.mrb[0].mxu0
        %v579 = vadd.f32 0.0, %v578
        %v580 = vpop.f32.mrb[0].mxu0
        %v581 = vpop.f32.mrb[0].mxu0
        %v582 = vpop.f32.mrb[0].mxu0
        %583 = vdwg.mxu0
        %v584 = vadd.f32 %v467, %v571
        %v585 = vadd.f32 %v468, %v574
        %v586 = vadd.f32 %v469, %v579
        %587 = vst [vmem:[#allocation2] sm:$0xff] %v584
        %588 = vst [vmem:[#allocation2 + $0x8] sm:$0xff] %v585
        %589 = vst [vmem:[#allocation2 + $0x10] sm:$0xff] %v586
        %p590 = scmp.eq.s32.totalorder %s26, 2
        // Predicated region
        $region57: #{tpu_custom_call.1} parent=39 // pred_check
          %p591 = pneg %p590
        $region58: #{tpu_custom_call.1} parent=39 // pred_check_branch
          %593 = sbr.rel (%p591) target = $region60
        $region59: #{tpu_custom_call.1} parent=39 // pred_region
          %v594 = vld [vmem:[#allocation2] sm:$0xff]
          %v595 = vld [vmem:[#allocation2 + $0x8] sm:$0xff]
          %v596 = vld [vmem:[#allocation2 + $0x10] sm:$0xff]
          %v597 = vld [vmem:[%s4] sm:$0x1]
          %v599 = vlaneseq
          %v600 = vshrl.u32 %v599, 7
          %v601 = vsub.s32 0, %v600
          %v602 = vrot.slane %v597, %v601
          %v604 = vadd.f32 %v594, %v602
          %v605 = vadd.f32 %v595, %v602
          %v606 = vadd.f32 %v596, %v602
          %607 = vst [vmem:[#allocation9] sm:$0xff] %v604
          %608 = vst [vmem:[#allocation9 + $0x8] sm:$0xff] %v605
          %609 = vst [vmem:[#allocation9 + $0x10] sm:$0xff] %v606
        $region60: #{tpu_custom_call.1} parent=39 // pred_fallthru
          _
        // Predicated region
        $region61: #{tpu_custom_call.1} parent=39 // pred_check
          %p610 = pneg %p176
        $region62: #{tpu_custom_call.1} parent=39 // pred_check_branch
          %612 = sbr.rel (%p610) target = $region64
        $region63: #{tpu_custom_call.1} parent=39 // pred_region
          %s613 = smul.u32 3, %s25
          %s615 = ssub.s32 384, 384
          %616 = vsyncadd [#allocation5], %s615
          %s617 = smul.addr %s613, 128
          %s618 = scalar_lea.hbm %s5, %s617
          %s619 = sshll.u32 [#allocation9], 4
          %s620 = int_to_ptr.vmem [resolvable:$true] %s619
          %625 = dma.vmem_to_hbm [thread:$0]  %s620, 384, %s618, [#allocation5], 128, 128, 8
        $region64: #{tpu_custom_call.1} parent=39 // pred_fallthru
          _
        // Predicated region
        $region65: #{tpu_custom_call.1} parent=39 // pred_check
          %p626 = pneg %p176
        $region66: #{tpu_custom_call.1} parent=39 // pred_check_branch
          %628 = sbr.rel (%p626) target = $region68
        $region67: #{tpu_custom_call.1} parent=39 // pred_region
          %629 = dma.done [#allocation5], 384
        $region68: #{tpu_custom_call.1} parent=39 // pred_fallthru
          _
      $region40: #{tpu_custom_call.1} parent=5 // pred_fallthru
        _
      %p630 = scmp.le.s32.totalorder 2, %s16
      // Predicated region
      $region69: #{tpu_custom_call.1} parent=5 // pred_check
        %p631 = pneg %p630
      $region70: #{tpu_custom_call.1} parent=5 // pred_check_branch
        %633 = sbr.rel (%p631) target = $region72
      $region71: #{tpu_custom_call.1} parent=5 // pred_region
        %s634 = ssub.s32 %s16, 2
      $region72: #{tpu_custom_call.1} parent=5 // pred_fallthru
        _
    $region6: #{tpu_custom_call.1} parent=1 // loop_footer
      %s20 = sadd.s32 1, %s16
    $region7: #{tpu_custom_call.1} parent=1 // loop_footer_branch
      %15 = sbr.rel target = $region3
    $region8: #{tpu_custom_call.1} parent=1 // loop_exit
      _
    %635 = vsyncpa [#allocation4], 1
    %s636 = scalar_lea.sflag [#allocation4], 1
    %637 = vsyncpa %s636, 1
    %638 = vsyncpa [#allocation7], 1
    %s639 = scalar_lea.sflag [#allocation7], 1
    %640 = vsyncpa %s639, 1
    %641 = vsyncpa [#allocation5], 1
    %s642 = scalar_lea.sflag [#allocation5], 1
    %643 = vsyncpa %s642, 1

</llo_original>
